<compile_context>
chip_gen: v7x
topology: tpu7x:2x2x1
jax: 0.10.0
libtpu: 0.0.40
codegen_flags: <defaults>
</compile_context>

<pallas_src>
import jax
import jax.numpy as jnp
from jax.experimental import pallas as pl
from jax.experimental.pallas import tpu as pltpu


def _round_up(x, m):
    return ((x + m - 1) // m) * m


def _num_tensorcores():
    """Best-effort TensorCore-per-chip query (v7x=2, v5e/v6e=1)."""
    try:
        info = pltpu.get_tpu_info()
        for attr in ("num_cores", "tensorcore_count", "num_tensorcores"):
            n = getattr(info, attr, None)
            if n:
                return int(n)
    except Exception:
        pass
    return 1


def _pick_batch_tile(B, num_tc=1):
    """Large, 128-aligned batch tiles; multi-step only when it buys real
    TensorCore parallelism (v7x)."""
    if B <= 128:
        # Single grid step; keep the sublane axis 8-aligned.
        return max(8, _round_up(B, 8))
    # Large tiles amortize the ~0.35us per-grid-step overhead; even a 1024-row
    # tile is only a few MB double-buffered, far under VMEM on all generations.
    tile = min(_round_up(B, 128), 1024)
    if num_tc > 1 and B >= 512:
        # v7x only: split so each TensorCore gets a full >=256-row MXU tile.
        per_core = _round_up(pl.cdiv(B, num_tc), 256)
        tile = min(tile, max(per_core, 256))
    return tile


def inverse_base_kernel(x_ref, w1_ref, b1_ref, w2_ref, b2_ref, w3_ref, b3_ref,
                        o_ref):
    # Layer 1: Linear(d_in -> d_h1) + ReLU. bf16 MXU inputs, f32 accumulation.
    h = jnp.dot(x_ref[...].astype(jnp.bfloat16), w1_ref[...],
                preferred_element_type=jnp.float32)
    h = jnp.maximum(h + b1_ref[...], 0.0)
    # Layer 2: Linear(d_h1 -> d_h2) + ReLU.
    h = jnp.dot(h.astype(jnp.bfloat16), w2_ref[...],
                preferred_element_type=jnp.float32)
    h = jnp.maximum(h + b2_ref[...], 0.0)
    # Layer 3: Linear(d_h2 -> d_out) + ReLU, stored at the real column count.
    h = jnp.dot(h.astype(jnp.bfloat16), w3_ref[...],
                preferred_element_type=jnp.float32)
    o_ref[...] = jnp.maximum(h + b3_ref[...], 0.0).astype(o_ref.dtype)


def prepare_params(params):
    """One-time conversion: bf16 weights (native MXU input, half the DMA
    bytes), f32 biases.  Hoisted out of the per-call path."""
    return tuple((w.astype(jnp.bfloat16), b.astype(jnp.float32))
                 for (w, b) in params)


def inverse_base_forward(x, prepared_params, *, batch_tile=None,
                         out_dtype=None):
    """x: [B, architecture[0]]. Returns [B, state_stack*obs_dim].

    `prepared_params` must come from prepare_params (bf16 weights).
    NOTE: if the producer of x can emit bf16, feed bf16 directly (halves the
    input read bytes); do NOT add a standalone wrapper-side astype.
    """
    (w1, b1), (w2, b2), (w3, b3) = prepared_params
    B, d_in = x.shape
    d_h1 = w1.shape[1]
    d_h2 = w2.shape[1]
    d_out = w3.shape[1]
    out_dtype = x.dtype if out_dtype is None else out_dtype

    if batch_tile is None:
        batch_tile = _pick_batch_tile(B, _num_tensorcores())
    batch_tile = max(8, _round_up(batch_tile, 8))

    # Ragged last block: OOB rows read unspecified data, OOB output rows are
    # dropped by Pallas; rows are independent, so real rows stay correct.
    grid = (pl.cdiv(B, batch_tile),)

    def const(shape):
        return pl.BlockSpec(shape, lambda i: (0, 0))

    flops = 2 * B * (d_in * d_h1 + d_h1 * d_h2 + d_h2 * d_out)
    bytes_accessed = (
        B * d_in * jnp.dtype(x.dtype).itemsize                 # x
        + (w1.size + w2.size + w3.size) * 2                    # bf16 weights
        + (b1.size + b2.size + b3.size) * 4                    # f32 biases
        + B * d_out * jnp.dtype(out_dtype).itemsize)           # output

    out = pl.pallas_call(
        inverse_base_kernel,
        out_shape=jax.ShapeDtypeStruct((B, d_out), out_dtype),
        grid_spec=pl.GridSpec(
            grid=grid,
            in_specs=[
                pl.BlockSpec((batch_tile, d_in), lambda i: (i, 0)),  # x tile
                const((d_in, d_h1)),   # W1 (bf16)
                const((1, d_h1)),      # b1
                const((d_h1, d_h2)),   # W2 (bf16)
                const((1, d_h2)),      # b2
                const((d_h2, d_out)),  # W3 (bf16)
                const((1, d_out)),     # b3
            ],
            out_specs=pl.BlockSpec((batch_tile, d_out), lambda i: (i, 0)),
        ),
        compiler_params=pltpu.CompilerParams(
            dimension_semantics=("parallel",)),
        cost_estimate=pl.CostEstimate(
            flops=flops, transcendentals=0, bytes_accessed=bytes_accessed),
    )(x, w1, b1, w2, b2, w3, b3)
    return out


def init_params(key, architecture, state_stack, obs_dim):
    """Deterministic synthetic init. Weights stored [in, out], bias [1, out]."""
    dims = list(architecture) + [state_stack * obs_dim]
    params = []
    for i in range(len(dims) - 1):
        key, kw, kb = jax.random.split(key, 3)
        fan_in = dims[i]
        bound = 1.0 / jnp.sqrt(fan_in)
        w = jax.random.uniform(kw, (dims[i], dims[i + 1]), jnp.float32,
                               -bound, bound)
        b = jax.random.uniform(kb, (1, dims[i + 1]), jnp.float32,
                               -bound, bound)
        params.append((w, b))
    return params


def reference_forward(x, params, compute_dtype=jnp.float32):
    """Pure-JAX reference. compute_dtype=jnp.bfloat16 mimics the kernel's
    bf16-input / f32-accumulate matmuls for tight comparison."""
    h = x
    for (w, b) in params:
        acc = jnp.dot(h.astype(compute_dtype), w.astype(compute_dtype),
                      preferred_element_type=jnp.float32)
        h = jnp.maximum(acc + b.astype(jnp.float32), 0.0)
    return h


if __name__ == "__main__":
    architecture = [64, 128, 256]
    state_stack = 4
    obs_dim = 8

    key = jax.random.PRNGKey(0)
    params = init_params(key, architecture, state_stack, obs_dim)
    prepared = prepare_params(params)   # bf16 weights, done once (not per call)

    # Case 1: small batch, exact single tile.
    key, kx = jax.random.split(key)
    x = jax.random.normal(kx, (8, architecture[0]), jnp.float32)
    out = jax.block_until_ready(inverse_base_forward(x, prepared))
    assert out.shape == (8, state_stack * obs_dim)
    ref_bf16 = reference_forward(x, params, compute_dtype=jnp.bfloat16)
    ref_f32 = reference_forward(x, params, compute_dtype=jnp.float32)
    assert jnp.allclose(out, ref_bf16, atol=1e-3, rtol=1e-3)
    assert jnp.allclose(out, ref_f32, atol=5e-2, rtol=5e-2)

    # Case 2: ragged small batch (tile > B, single ragged block).
    key, kx2 = jax.random.split(key)
    x2 = jax.random.normal(kx2, (12, architecture[0]), jnp.float32)
    out2 = jax.block_until_ready(inverse_base_forward(x2, prepared))
    assert out2.shape == (12, state_stack * obs_dim)
    ref2 = reference_forward(x2, params, compute_dtype=jnp.bfloat16)
    assert jnp.allclose(out2, ref2, atol=1e-3, rtol=1e-3)

    # Case 3: mid-sized ragged batch (exercises the 128-aligned big-tile path).
    key, kx3 = jax.random.split(key)
    x3 = jax.random.normal(kx3, (200, architecture[0]), jnp.float32)
    out3 = jax.block_until_ready(inverse_base_forward(x3, prepared))
    assert out3.shape == (200, state_stack * obs_dim)
    ref3 = reference_forward(x3, params, compute_dtype=jnp.bfloat16)
    assert jnp.allclose(out3, ref3, atol=1e-3, rtol=1e-3)

    print("KERNEL_OK")
</pallas_src>

<mosaic_0001>
module attributes {stable_mosaic.version = 11 : i64} {
  func.func @inverse_base_kernel(%arg0: i32, %arg1: memref<8x64xf32, #tpu.memory_space<vmem>>, %arg2: memref<64x128xbf16, #tpu.memory_space<vmem>>, %arg3: memref<1x128xf32, #tpu.memory_space<vmem>>, %arg4: memref<128x256xbf16, #tpu.memory_space<vmem>>, %arg5: memref<1x256xf32, #tpu.memory_space<vmem>>, %arg6: memref<256x32xbf16, #tpu.memory_space<vmem>>, %arg7: memref<1x32xf32, #tpu.memory_space<vmem>>, %arg8: memref<8x32xf32, #tpu.memory_space<vmem>>) attributes {dimension_semantics = [#tpu.dimension_semantics<parallel>], iteration_bounds = array<i64: 1>, scalar_prefetch = 0 : i64, scratch_operands = 0 : i64, tpu.core_type = #tpu.core_type<tc>, window_params = [{transform_indices = @transform_0, window_bounds = array<i64: 8, 64>}, {pipeline_mode = #tpu.pipeline_mode<synchronous>, transform_indices = @transform_1, window_bounds = array<i64: 64, 128>}, {pipeline_mode = #tpu.pipeline_mode<synchronous>, transform_indices = @transform_2, window_bounds = array<i64: 1, 128>}, {pipeline_mode = #tpu.pipeline_mode<synchronous>, transform_indices = @transform_3, window_bounds = array<i64: 128, 256>}, {pipeline_mode = #tpu.pipeline_mode<synchronous>, transform_indices = @transform_4, window_bounds = array<i64: 1, 256>}, {pipeline_mode = #tpu.pipeline_mode<synchronous>, transform_indices = @transform_5, window_bounds = array<i64: 256, 32>}, {pipeline_mode = #tpu.pipeline_mode<synchronous>, transform_indices = @transform_6, window_bounds = array<i64: 1, 32>}, {transform_indices = @transform_7, window_bounds = array<i64: 8, 32>}]} {
    %c0 = arith.constant 0 : index
    %c0_0 = arith.constant 0 : index
    %0 = vector.load %arg1[%c0, %c0_0] : memref<8x64xf32, #tpu.memory_space<vmem>>, vector<8x64xf32>
    %1 = arith.truncf %0 : vector<8x64xf32> to vector<8x64xbf16>
    %c0_1 = arith.constant 0 : index
    %c0_2 = arith.constant 0 : index
    %2 = vector.load %arg2[%c0_1, %c0_2] : memref<64x128xbf16, #tpu.memory_space<vmem>>, vector<64x128xbf16>
    %cst = arith.constant dense<0.000000e+00> : vector<8x128xf32>
    %3 = tpu.matmul %1, %2, %cst {dimension_numbers = #tpu.dot_dimension_numbers<[1], [0], [0], [1], [0, 0, 1, 1], [], []>} : vector<8x64xbf16>, vector<64x128xbf16>, vector<8x128xf32> -> vector<8x128xf32>
    %c0_3 = arith.constant 0 : index
    %c0_4 = arith.constant 0 : index
    %4 = vector.load %arg3[%c0_3, %c0_4] : memref<1x128xf32, #tpu.memory_space<vmem>>, vector<1x128xf32>
    %5 = vector.broadcast %4 : vector<1x128xf32> to vector<8x128xf32>
    %6 = arith.addf %3, %5 : vector<8x128xf32>
    %cst_5 = arith.constant 0.000000e+00 : f32
    %7 = vector.broadcast %cst_5 : f32 to vector<8x128xf32>
    %8 = arith.maximumf %6, %7 : vector<8x128xf32>
    %9 = arith.truncf %8 : vector<8x128xf32> to vector<8x128xbf16>
    %c0_6 = arith.constant 0 : index
    %c0_7 = arith.constant 0 : index
    %10 = vector.load %arg4[%c0_6, %c0_7] : memref<128x256xbf16, #tpu.memory_space<vmem>>, vector<128x256xbf16>
    %cst_8 = arith.constant dense<0.000000e+00> : vector<8x256xf32>
    %11 = tpu.matmul %9, %10, %cst_8 {dimension_numbers = #tpu.dot_dimension_numbers<[1], [0], [0], [1], [0, 0, 1, 1], [], []>} : vector<8x128xbf16>, vector<128x256xbf16>, vector<8x256xf32> -> vector<8x256xf32>
    %c0_9 = arith.constant 0 : index
    %c0_10 = arith.constant 0 : index
    %12 = vector.load %arg5[%c0_9, %c0_10] : memref<1x256xf32, #tpu.memory_space<vmem>>, vector<1x256xf32>
    %13 = vector.broadcast %12 : vector<1x256xf32> to vector<8x256xf32>
    %14 = arith.addf %11, %13 : vector<8x256xf32>
    %cst_11 = arith.constant 0.000000e+00 : f32
    %15 = vector.broadcast %cst_11 : f32 to vector<8x256xf32>
    %16 = arith.maximumf %14, %15 : vector<8x256xf32>
    %17 = arith.truncf %16 : vector<8x256xf32> to vector<8x256xbf16>
    %c0_12 = arith.constant 0 : index
    %c0_13 = arith.constant 0 : index
    %18 = vector.load %arg6[%c0_12, %c0_13] : memref<256x32xbf16, #tpu.memory_space<vmem>>, vector<256x32xbf16>
    %cst_14 = arith.constant dense<0.000000e+00> : vector<8x32xf32>
    %19 = tpu.matmul %17, %18, %cst_14 {dimension_numbers = #tpu.dot_dimension_numbers<[1], [0], [0], [1], [0, 0, 1, 1], [], []>} : vector<8x256xbf16>, vector<256x32xbf16>, vector<8x32xf32> -> vector<8x32xf32>
    %c0_15 = arith.constant 0 : index
    %c0_16 = arith.constant 0 : index
    %20 = vector.load %arg7[%c0_15, %c0_16] : memref<1x32xf32, #tpu.memory_space<vmem>>, vector<1x32xf32>
    %21 = vector.broadcast %20 : vector<1x32xf32> to vector<8x32xf32>
    %22 = arith.addf %19, %21 : vector<8x32xf32>
    %cst_17 = arith.constant 0.000000e+00 : f32
    %23 = vector.broadcast %cst_17 : f32 to vector<8x32xf32>
    %24 = arith.maximumf %22, %23 : vector<8x32xf32>
    %c0_18 = arith.constant 0 : index
    %c0_19 = arith.constant 0 : index
    %25 = vector.load %arg8[%c0_18, %c0_19] : memref<8x32xf32, #tpu.memory_space<vmem>>, vector<8x32xf32>
    tpu.vector_store %arg8[%c0_18, %c0_19], %24 {strides = array<i32>} : memref<8x32xf32, #tpu.memory_space<vmem>>, vector<8x32xf32>,
    return
  }
  func.func @transform_0(%arg0: i32) -> (i32, i32) {
    %c0_i32 = arith.constant 0 : i32
    %c0_i32_0 = arith.constant 0 : i32
    return %arg0, %c0_i32 : i32, i32
  }
  func.func @transform_1(%arg0: i32) -> (i32, i32) {
    %c0_i32 = arith.constant 0 : i32
    %c0_i32_0 = arith.constant 0 : i32
    %c0_i32_1 = arith.constant 0 : i32
    return %c0_i32, %c0_i32_0 : i32, i32
  }
  func.func @transform_2(%arg0: i32) -> (i32, i32) {
    %c0_i32 = arith.constant 0 : i32
    %c0_i32_0 = arith.constant 0 : i32
    %c0_i32_1 = arith.constant 0 : i32
    return %c0_i32, %c0_i32_0 : i32, i32
  }
  func.func @transform_3(%arg0: i32) -> (i32, i32) {
    %c0_i32 = arith.constant 0 : i32
    %c0_i32_0 = arith.constant 0 : i32
    %c0_i32_1 = arith.constant 0 : i32
    return %c0_i32, %c0_i32_0 : i32, i32
  }
  func.func @transform_4(%arg0: i32) -> (i32, i32) {
    %c0_i32 = arith.constant 0 : i32
    %c0_i32_0 = arith.constant 0 : i32
    %c0_i32_1 = arith.constant 0 : i32
    return %c0_i32, %c0_i32_0 : i32, i32
  }
  func.func @transform_5(%arg0: i32) -> (i32, i32) {
    %c0_i32 = arith.constant 0 : i32
    %c0_i32_0 = arith.constant 0 : i32
    %c0_i32_1 = arith.constant 0 : i32
    return %c0_i32, %c0_i32_0 : i32, i32
  }
  func.func @transform_6(%arg0: i32) -> (i32, i32) {
    %c0_i32 = arith.constant 0 : i32
    %c0_i32_0 = arith.constant 0 : i32
    %c0_i32_1 = arith.constant 0 : i32
    return %c0_i32, %c0_i32_0 : i32, i32
  }
  func.func @transform_7(%arg0: i32) -> (i32, i32) {
    %c0_i32 = arith.constant 0 : i32
    %c0_i32_0 = arith.constant 0 : i32
    return %arg0, %c0_i32 : i32, i32
  }
}

</mosaic_0001>

<llo_original>
// kernel: tpu_custom_call.1
$region0: #{tpu_custom_call.1}
  #allocation0 [shape = 'u32[]', space=smem, size = 0x4, offset = 0x4, fixed_abs, tag = 'smem constant byte address 0x4 - core index']
  #allocation1 [shape = 'u32[144,128]{1,0:T(1,128)}', space=vmem, size = 0x12000, scoped, tag = 'internal scratch']
  %s0 = inlined_call_operand.vmem [shape: f32[8,64], index: 0, kind: input, shape index: {}]
  %s1 = inlined_call_operand.vmem [shape: bf16[64,128], index: 1, kind: input, shape index: {}]
  %s2 = inlined_call_operand.vmem [shape: f32[1,128], index: 2, kind: input, shape index: {}]
  %s3 = inlined_call_operand.vmem [shape: bf16[128,256], index: 3, kind: input, shape index: {}]
  %s4 = inlined_call_operand.vmem [shape: f32[1,256], index: 4, kind: input, shape index: {}]
  %s5 = inlined_call_operand.vmem [shape: bf16[256,32], index: 5, kind: input, shape index: {}]
  %s6 = inlined_call_operand.vmem [shape: f32[1,32], index: 6, kind: input, shape index: {}]
  %s7 = inlined_call_operand.hbm [shape: f32[8,32], index: 7, kind: output, shape index: {}]
  %s8 = sld [smem:[#allocation0]]
  $region38: #{tpu_custom_call.1} parent=0
    _
  %s10 = ssub.s32 1, %s8
  %s11 = scalar_select 0, %s10, %s8
  $region1: #{tpu_custom_call.1} parent=0
    #allocation2 [shape = 'u8[4096]{0}', space=vmem, size = 0x1000, scoped, tag = 'output window, operand 0, single buffered']
    #allocation3 [shape = 's32[1]{0}', space=sflag, size = 0x4, scoped, tag = 'scoped memory for tpu_custom_call.1']
    %12 = vsyncpa [#allocation3], 0
    // Predicated region
    $region2: #{tpu_custom_call.1} parent=1 // pred_check
      _
    $region3: #{tpu_custom_call.1} parent=1 // pred_check_branch
      %14 = sbr.rel (0) target = $region5
    $region4: #{tpu_custom_call.1} parent=1 // pred_region
      _
    $region5: #{tpu_custom_call.1} parent=1 // pred_fallthru
      _
    // Predicated region
    $region6: #{tpu_custom_call.1} parent=1 // pred_check
      _
    $region7: #{tpu_custom_call.1} parent=1 // pred_check_branch
      %16 = sbr.rel (0) target = $region9
    $region8: #{tpu_custom_call.1} parent=1 // pred_region
      _
    $region9: #{tpu_custom_call.1} parent=1 // pred_fallthru
      _
    // Predicated region
    $region10: #{tpu_custom_call.1} parent=1 // pred_check
      _
    $region11: #{tpu_custom_call.1} parent=1 // pred_check_branch
      %18 = sbr.rel (0) target = $region13
    $region12: #{tpu_custom_call.1} parent=1 // pred_region
      _
    $region13: #{tpu_custom_call.1} parent=1 // pred_fallthru
      _
    // Predicated region
    $region14: #{tpu_custom_call.1} parent=1 // pred_check
      _
    $region15: #{tpu_custom_call.1} parent=1 // pred_check_branch
      %20 = sbr.rel (0) target = $region17
    $region16: #{tpu_custom_call.1} parent=1 // pred_region
      _
    $region17: #{tpu_custom_call.1} parent=1 // pred_fallthru
      _
    // Predicated region
    $region18: #{tpu_custom_call.1} parent=1 // pred_check
      _
    $region19: #{tpu_custom_call.1} parent=1 // pred_check_branch
      %22 = sbr.rel (0) target = $region21
    $region20: #{tpu_custom_call.1} parent=1 // pred_region
      _
    $region21: #{tpu_custom_call.1} parent=1 // pred_fallthru
      _
    // Predicated region
    $region22: #{tpu_custom_call.1} parent=1 // pred_check
      _
    $region23: #{tpu_custom_call.1} parent=1 // pred_check_branch
      %24 = sbr.rel (0) target = $region25
    $region24: #{tpu_custom_call.1} parent=1 // pred_region
      _
    $region25: #{tpu_custom_call.1} parent=1 // pred_fallthru
      _
    // Predicated region
    $region26: #{tpu_custom_call.1} parent=1 // pred_check
      _
    $region27: #{tpu_custom_call.1} parent=1 // pred_check_branch
      %26 = sbr.rel (0) target = $region29
    $region28: #{tpu_custom_call.1} parent=1 // pred_region
      _
    $region29: #{tpu_custom_call.1} parent=1 // pred_fallthru
      _
    %v28 = vld [vmem:[%s0] sm:$0xff]
    %v29 = vpack.c.bf16 %v28, %v28
    %v30 = vld [vmem:[%s1] sm:$0xf]
    %v31 = vld [vmem:[%s1 + $0x4] sm:$0xf]
    %v32 = vld [vmem:[%s1 + $0x8] sm:$0xf]
    %v33 = vld [vmem:[%s1 + $0xc] sm:$0xf]
    %v34 = vld [vmem:[%s1 + $0x10] sm:$0xf]
    %v35 = vld [vmem:[%s1 + $0x14] sm:$0xf]
    %v36 = vld [vmem:[%s1 + $0x18] sm:$0xf]
    %v37 = vld [vmem:[%s1 + $0x1c] sm:$0xf]
    %v38 = vld [vmem:[%s2] sm:$0x1]
    %v40 = vlaneseq
    %v41 = vshrl.u32 %v40, 7
    %v42 = vsub.s32 0, %v41
    %v43 = vrot.slane %v38, %v42
    %v53 = vunpack.c.l.b16 %v30
    %v54 = vunpack.c.l.b16 %v31
    %v55 = vunpack.c.l.b16 %v32
    %v56 = vunpack.c.l.b16 %v33
    %v57 = vunpack.c.l.b16 %v34
    %v58 = vunpack.c.l.b16 %v35
    %v59 = vunpack.c.l.b16 %v36
    %v60 = vunpack.c.l.b16 %v37
    %v61 = vpack.c.b16 %v54, %v53
    %v62 = vpack.c.b16 %v56, %v55
    %v63 = vpack.c.b16 %v58, %v57
    %v64 = vpack.c.b16 %v60, %v59
    %vm69 = vcmask 523264
    %v71 = vsel %vm69, %v29, 0
    %73 = vmatprep.subr.bf16.mxu0 0
    %74 = vmatpush1.bf16.msra.mxu0 %v61
    %75 = vmatprep.subr.bf16.mxu0 0
    %76 = vmatpush1.bf16.msra.mxu0 %v62
    %77 = vmatprep.subr.bf16.mxu0 0
    %78 = vmatpush1.bf16.msra.mxu0 %v63
    %79 = vmatprep.subr.bf16.mxu0 0
    %80 = vmatpush1.bf16.msra.mxu0 %v64
    %81 = vmatprep.subr.bf16.mxu0 0
    %82 = vmatpush1.bf16.msra.mxu0 0
    %83 = vmatprep.subr.bf16.mxu0 0
    %84 = vmatpush1.bf16.msra.mxu0 0
    %85 = vmatprep.subr.bf16.mxu0 0
    %86 = vmatpush1.bf16.msra.mxu0 0
    %87 = vmatprep.subr.bf16.mxu0 0
    %88 = vmatpush1.bf16.msra.mxu0 0
    %89 = vmatprep.subr.bf16.mxu0 0
    %90 = vmatpush1.bf16.msra.mxu0 0
    %91 = vmatprep.subr.bf16.mxu0 0
    %92 = vmatpush1.bf16.msra.mxu0 0
    %93 = vmatprep.subr.bf16.mxu0 0
    %94 = vmatpush1.bf16.msra.mxu0 0
    %95 = vmatprep.subr.bf16.mxu0 0
    %96 = vmatpush1.bf16.msra.mxu0 0
    %97 = vmatprep.subr.bf16.mxu0 0
    %98 = vmatpush1.bf16.msra.mxu0 0
    %99 = vmatprep.subr.bf16.mxu0 0
    %100 = vmatpush1.bf16.msra.mxu0 0
    %101 = vmatprep.subr.bf16.mxu0 0
    %102 = vmatpush1.bf16.msra.mxu0 0
    %103 = vmatprep.subr.bf16.mxu0 0
    %104 = vmatpush1.bf16.msra.mxu0 0
    %105 = vmatprep.mubr.bf16.mxu0 0
    %106 = vmatmul.mubr.bf16.gmra.mrb[0].mxu0 %v71
    %v107 = vpop.f32.mrb[0].mxu0
    %v108 = vadd.f32 %v43, %v107
    %v109 = vpop.f32.mrb[0].mxu0
    %v110 = vpop.f32.mrb[0].mxu0
    %v111 = vpop.f32.mrb[0].mxu0
    %112 = vdwg.mxu0
    %v113 = vmax.f32 %v108, 0.0
    %v114 = vpack.c.bf16 %v113, %v113
    %v115 = vld [vmem:[%s3] sm:$0xff]
    %v116 = vld [vmem:[%s3 + $0x8] sm:$0xff]
    %v117 = vld [vmem:[%s3 + $0x10] sm:$0xff]
    %v118 = vld [vmem:[%s3 + $0x18] sm:$0xff]
    %v119 = vld [vmem:[%s3 + $0x20] sm:$0xff]
    %v120 = vld [vmem:[%s3 + $0x28] sm:$0xff]
    %v121 = vld [vmem:[%s3 + $0x30] sm:$0xff]
    %v122 = vld [vmem:[%s3 + $0x38] sm:$0xff]
    %v123 = vld [vmem:[%s3 + $0x40] sm:$0xff]
    %v124 = vld [vmem:[%s3 + $0x48] sm:$0xff]
    %v125 = vld [vmem:[%s3 + $0x50] sm:$0xff]
    %v126 = vld [vmem:[%s3 + $0x58] sm:$0xff]
    %v127 = vld [vmem:[%s3 + $0x60] sm:$0xff]
    %v128 = vld [vmem:[%s3 + $0x68] sm:$0xff]
    %v129 = vld [vmem:[%s3 + $0x70] sm:$0xff]
    %v130 = vld [vmem:[%s3 + $0x78] sm:$0xff]
    %v131 = vld [vmem:[%s4] sm:$0x3]
    %v133 = vlaneseq
    %v134 = vshrl.u32 %v133, 7
    %v135 = vsub.s32 0, %v134
    %v136 = vrot.slane %v131, %v135
    %v137 = vlaneseq
    %v138 = vshrl.u32 %v137, 7
    %v139 = vsub.s32 1, %v138
    %v140 = vrot.slane %v131, %v139
    %v159 = vunpack.c.l.b16 %v115
    %v160 = vunpack.c.h.b16 %v115
    %v161 = vunpack.c.l.b16 %v116
    %v162 = vunpack.c.h.b16 %v116
    %v163 = vunpack.c.l.b16 %v117
    %v164 = vunpack.c.h.b16 %v117
    %v165 = vunpack.c.l.b16 %v118
    %v166 = vunpack.c.h.b16 %v118
    %v167 = vunpack.c.l.b16 %v119
    %v168 = vunpack.c.h.b16 %v119
    %v169 = vunpack.c.l.b16 %v120
    %v170 = vunpack.c.h.b16 %v120
    %v171 = vunpack.c.l.b16 %v121
    %v172 = vunpack.c.h.b16 %v121
    %v173 = vunpack.c.l.b16 %v122
    %v174 = vunpack.c.h.b16 %v122
    %v175 = vunpack.c.l.b16 %v123
    %v176 = vunpack.c.h.b16 %v123
    %v177 = vunpack.c.l.b16 %v124
    %v178 = vunpack.c.h.b16 %v124
    %v179 = vunpack.c.l.b16 %v125
    %v180 = vunpack.c.h.b16 %v125
    %v181 = vunpack.c.l.b16 %v126
    %v182 = vunpack.c.h.b16 %v126
    %v183 = vunpack.c.l.b16 %v127
    %v184 = vunpack.c.h.b16 %v127
    %v185 = vunpack.c.l.b16 %v128
    %v186 = vunpack.c.h.b16 %v128
    %v187 = vunpack.c.l.b16 %v129
    %v188 = vunpack.c.h.b16 %v129
    %v189 = vunpack.c.l.b16 %v130
    %v190 = vunpack.c.h.b16 %v130
    %v191 = vpack.c.b16 %v161, %v159
    %v192 = vpack.c.b16 %v162, %v160
    %v193 = vpack.c.b16 %v165, %v163
    %v194 = vpack.c.b16 %v166, %v164
    %v195 = vpack.c.b16 %v169, %v167
    %v196 = vpack.c.b16 %v170, %v168
    %v197 = vpack.c.b16 %v173, %v171
    %v198 = vpack.c.b16 %v174, %v172
    %v199 = vpack.c.b16 %v177, %v175
    %v200 = vpack.c.b16 %v178, %v176
    %v201 = vpack.c.b16 %v181, %v179
    %v202 = vpack.c.b16 %v182, %v180
    %v203 = vpack.c.b16 %v185, %v183
    %v204 = vpack.c.b16 %v186, %v184
    %v205 = vpack.c.b16 %v189, %v187
    %v206 = vpack.c.b16 %v190, %v188
    %223 = vmatprep.subr.bf16.mxu0 %v192
    %224 = vmatpush1.bf16.msra.mxu0 %v191
    %225 = vmatprep.subr.bf16.mxu0 %v194
    %226 = vmatpush1.bf16.msra.mxu0 %v193
    %227 = vmatprep.subr.bf16.mxu0 %v196
    %228 = vmatpush1.bf16.msra.mxu0 %v195
    %229 = vmatprep.subr.bf16.mxu0 %v198
    %230 = vmatpush1.bf16.msra.mxu0 %v197
    %231 = vmatprep.subr.bf16.mxu0 %v200
    %232 = vmatpush1.bf16.msra.mxu0 %v199
    %233 = vmatprep.subr.bf16.mxu0 %v202
    %234 = vmatpush1.bf16.msra.mxu0 %v201
    %235 = vmatprep.subr.bf16.mxu0 %v204
    %236 = vmatpush1.bf16.msra.mxu0 %v203
    %237 = vmatprep.subr.bf16.mxu0 %v206
    %238 = vmatpush1.bf16.msra.mxu0 %v205
    %239 = vmatprep.subr.bf16.mxu0 0
    %240 = vmatpush1.bf16.msra.mxu0 0
    %241 = vmatprep.subr.bf16.mxu0 0
    %242 = vmatpush1.bf16.msra.mxu0 0
    %243 = vmatprep.subr.bf16.mxu0 0
    %244 = vmatpush1.bf16.msra.mxu0 0
    %245 = vmatprep.subr.bf16.mxu0 0
    %246 = vmatpush1.bf16.msra.mxu0 0
    %247 = vmatprep.subr.bf16.mxu0 0
    %248 = vmatpush1.bf16.msra.mxu0 0
    %249 = vmatprep.subr.bf16.mxu0 0
    %250 = vmatpush1.bf16.msra.mxu0 0
    %251 = vmatprep.subr.bf16.mxu0 0
    %252 = vmatpush1.bf16.msra.mxu0 0
    %253 = vmatprep.subr.bf16.mxu0 0
    %254 = vmatpush1.bf16.msra.mxu0 0
    %255 = vmatprep.mubr.bf16.mxu0 0
    %256 = vmatmul.mubr.bf16.gmra.mrb[0].mxu0 %v114
    %v257 = vpop.f32.mrb[0].mxu0
    %v258 = vadd.f32 %v136, %v257
    %v259 = vpop.f32.mrb[0].mxu0
    %v260 = vadd.f32 %v140, %v259
    %v261 = vpop.f32.mrb[0].mxu0
    %v262 = vpop.f32.mrb[0].mxu0
    %263 = vdwg.mxu0
    %v264 = vmax.f32 %v258, 0.0
    %v265 = vmax.f32 %v260, 0.0
    %v266 = vpack.c.bf16 %v264, %v264
    %v267 = vpack.c.bf16 %v265, %v265
    %v268 = vld [vmem:[%s5] sm:$0xf]
    %v269 = vld [vmem:[%s5 + $0x4] sm:$0xf]
    %v270 = vld [vmem:[%s5 + $0x8] sm:$0xf]
    %v271 = vld [vmem:[%s5 + $0xc] sm:$0xf]
    %v272 = vld [vmem:[%s5 + $0x10] sm:$0xf]
    %v273 = vld [vmem:[%s5 + $0x14] sm:$0xf]
    %v274 = vld [vmem:[%s5 + $0x18] sm:$0xf]
    %v275 = vld [vmem:[%s5 + $0x1c] sm:$0xf]
    %v276 = vld [vmem:[%s5 + $0x20] sm:$0xf]
    %v277 = vld [vmem:[%s5 + $0x24] sm:$0xf]
    %v278 = vld [vmem:[%s5 + $0x28] sm:$0xf]
    %v279 = vld [vmem:[%s5 + $0x2c] sm:$0xf]
    %v280 = vld [vmem:[%s5 + $0x30] sm:$0xf]
    %v281 = vld [vmem:[%s5 + $0x34] sm:$0xf]
    %v282 = vld [vmem:[%s5 + $0x38] sm:$0xf]
    %v283 = vld [vmem:[%s5 + $0x3c] sm:$0xf]
    %v284 = vld [vmem:[%s5 + $0x40] sm:$0xf]
    %v285 = vld [vmem:[%s5 + $0x44] sm:$0xf]
    %v286 = vld [vmem:[%s5 + $0x48] sm:$0xf]
    %v287 = vld [vmem:[%s5 + $0x4c] sm:$0xf]
    %v288 = vld [vmem:[%s5 + $0x50] sm:$0xf]
    %v289 = vld [vmem:[%s5 + $0x54] sm:$0xf]
    %v290 = vld [vmem:[%s5 + $0x58] sm:$0xf]
    %v291 = vld [vmem:[%s5 + $0x5c] sm:$0xf]
    %v292 = vld [vmem:[%s5 + $0x60] sm:$0xf]
    %v293 = vld [vmem:[%s5 + $0x64] sm:$0xf]
    %v294 = vld [vmem:[%s5 + $0x68] sm:$0xf]
    %v295 = vld [vmem:[%s5 + $0x6c] sm:$0xf]
    %v296 = vld [vmem:[%s5 + $0x70] sm:$0xf]
    %v297 = vld [vmem:[%s5 + $0x74] sm:$0xf]
    %v298 = vld [vmem:[%s5 + $0x78] sm:$0xf]
    %v299 = vld [vmem:[%s5 + $0x7c] sm:$0xf]
    %v300 = vld [vmem:[%s6] sm:$0x1]
    %v302 = vlaneseq
    %v303 = vshrl.u32 %v302, 7
    %v304 = vsub.s32 0, %v303
    %v305 = vrot.slane %v300, %v304
    %v339 = vunpack.c.l.b16 %v268
    %v340 = vunpack.c.l.b16 %v269
    %v341 = vunpack.c.l.b16 %v270
    %v342 = vunpack.c.l.b16 %v271
    %v343 = vunpack.c.l.b16 %v272
    %v344 = vunpack.c.l.b16 %v273
    %v345 = vunpack.c.l.b16 %v274
    %v346 = vunpack.c.l.b16 %v275
    %v347 = vunpack.c.l.b16 %v276
    %v348 = vunpack.c.l.b16 %v277
    %v349 = vunpack.c.l.b16 %v278
    %v350 = vunpack.c.l.b16 %v279
    %v351 = vunpack.c.l.b16 %v280
    %v352 = vunpack.c.l.b16 %v281
    %v353 = vunpack.c.l.b16 %v282
    %v354 = vunpack.c.l.b16 %v283
    %v355 = vunpack.c.l.b16 %v284
    %v356 = vunpack.c.l.b16 %v285
    %v357 = vunpack.c.l.b16 %v286
    %v358 = vunpack.c.l.b16 %v287
    %v359 = vunpack.c.l.b16 %v288
    %v360 = vunpack.c.l.b16 %v289
    %v361 = vunpack.c.l.b16 %v290
    %v362 = vunpack.c.l.b16 %v291
    %v363 = vunpack.c.l.b16 %v292
    %v364 = vunpack.c.l.b16 %v293
    %v365 = vunpack.c.l.b16 %v294
    %v366 = vunpack.c.l.b16 %v295
    %v367 = vunpack.c.l.b16 %v296
    %v368 = vunpack.c.l.b16 %v297
    %v369 = vunpack.c.l.b16 %v298
    %v370 = vunpack.c.l.b16 %v299
    %v371 = vpack.c.b16 %v340, %v339
    %v372 = vpack.c.b16 %v342, %v341
    %v373 = vpack.c.b16 %v344, %v343
    %v374 = vpack.c.b16 %v346, %v345
    %v375 = vpack.c.b16 %v348, %v347
    %v376 = vpack.c.b16 %v350, %v349
    %v377 = vpack.c.b16 %v352, %v351
    %v378 = vpack.c.b16 %v354, %v353
    %v379 = vpack.c.b16 %v356, %v355
    %v380 = vpack.c.b16 %v358, %v357
    %v381 = vpack.c.b16 %v360, %v359
    %v382 = vpack.c.b16 %v362, %v361
    %v383 = vpack.c.b16 %v364, %v363
    %v384 = vpack.c.b16 %v366, %v365
    %v385 = vpack.c.b16 %v368, %v367
    %v386 = vpack.c.b16 %v370, %v369
    %403 = vmatprep.subr.bf16.mxu0 0
    %404 = vmatpush1.bf16.msra.mxu0 %v371
    %405 = vmatprep.subr.bf16.mxu0 0
    %406 = vmatpush1.bf16.msra.mxu0 %v372
    %407 = vmatprep.subr.bf16.mxu0 0
    %408 = vmatpush1.bf16.msra.mxu0 %v373
    %409 = vmatprep.subr.bf16.mxu0 0
    %410 = vmatpush1.bf16.msra.mxu0 %v374
    %411 = vmatprep.subr.bf16.mxu0 0
    %412 = vmatpush1.bf16.msra.mxu0 %v375
    %413 = vmatprep.subr.bf16.mxu0 0
    %414 = vmatpush1.bf16.msra.mxu0 %v376
    %415 = vmatprep.subr.bf16.mxu0 0
    %416 = vmatpush1.bf16.msra.mxu0 %v377
    %417 = vmatprep.subr.bf16.mxu0 0
    %418 = vmatpush1.bf16.msra.mxu0 %v378
    %419 = vmatprep.subr.bf16.mxu0 0
    %420 = vmatpush1.bf16.msra.mxu0 %v379
    %421 = vmatprep.subr.bf16.mxu0 0
    %422 = vmatpush1.bf16.msra.mxu0 %v380
    %423 = vmatprep.subr.bf16.mxu0 0
    %424 = vmatpush1.bf16.msra.mxu0 %v381
    %425 = vmatprep.subr.bf16.mxu0 0
    %426 = vmatpush1.bf16.msra.mxu0 %v382
    %427 = vmatprep.subr.bf16.mxu0 0
    %428 = vmatpush1.bf16.msra.mxu0 %v383
    %429 = vmatprep.subr.bf16.mxu0 0
    %430 = vmatpush1.bf16.msra.mxu0 %v384
    %431 = vmatprep.subr.bf16.mxu0 0
    %432 = vmatpush1.bf16.msra.mxu0 %v385
    %433 = vmatprep.subr.bf16.mxu0 0
    %434 = vmatpush1.bf16.msra.mxu0 %v386
    %435 = vmatprep.mubr.bf16.mxu0 %v267
    %436 = vmatmul.mubr.bf16.gmra.mrb[0].mxu0 %v266
    %v437 = vpop.f32.mrb[0].mxu0
    %v438 = vadd.f32 %v305, %v437
    %v439 = vpop.f32.mrb[0].mxu0
    %v440 = vpop.f32.mrb[0].mxu0
    %v441 = vpop.f32.mrb[0].mxu0
    %442 = vdwg.mxu0
    %v443 = vmax.f32 %v438, 0.0
    %vm444 = vcmask 261120
    %445 = vst.msk [vmem:[#allocation2] sm:$0xff] %vm444, %v443
    // Predicated region
    $region30: #{tpu_custom_call.1} parent=1 // pred_check
      _
    $region31: #{tpu_custom_call.1} parent=1 // pred_check_branch
      %447 = sbr.rel (0) target = $region33
    $region32: #{tpu_custom_call.1} parent=1 // pred_region
      %s449 = ssub.s32 128, 128
      %450 = vsyncadd [#allocation3], %s449
      %s452 = sshll.u32 [#allocation2], 4
      %s453 = int_to_ptr.vmem [resolvable:$true] %s452
      %455 = dma.vmem_to_hbm [thread:$0]  %s453, 128, %s7, [#allocation3]
    $region33: #{tpu_custom_call.1} parent=1 // pred_fallthru
      _
    // Predicated region
    $region34: #{tpu_custom_call.1} parent=1 // pred_check
      _
    $region35: #{tpu_custom_call.1} parent=1 // pred_check_branch
      %457 = sbr.rel (0) target = $region37
    $region36: #{tpu_custom_call.1} parent=1 // pred_region
      %458 = dma.done [#allocation3], 128
    $region37: #{tpu_custom_call.1} parent=1 // pred_fallthru
      _
    %459 = vsyncpa [#allocation3], 1

</llo_original>
